<compile_context>
chip_gen: v5e
topology: v5e:2x2
jax: 0.10.0
libtpu: 0.0.40
codegen_flags: <defaults>
</compile_context>

<pallas_src>
import functools

import jax
import jax.numpy as jnp
from jax.experimental import pallas as pl
from jax.experimental.pallas import tpu as pltpu


def v_kernel(obs_ref, w1_ref, gb1_ref, wm_ref, gbm_ref, wo_ref, bo_ref,
             out_ref, *, num_layers, eps):
    """Fused forward (batch on lanes):
       x = obs.T;  [x = relu(BN(W @ x))]*;  out = sum_h(wo_h * x_h) + bo."""

    def bn_relu(h, gb):
        # h: (H, B); gb: (H, 2) columns = [gamma, beta].
        # Training-mode BN: per-channel batch mean and biased batch variance,
        # computed as lane (XLU) reductions.  gamma folded into rsqrt scale;
        # centering done once and reused.
        gamma = gb[:, 0:1]
        beta = gb[:, 1:2]
        mean = jnp.mean(h, axis=1, keepdims=True)          # (H, 1)
        hc = h - mean
        var = jnp.mean(hc * hc, axis=1, keepdims=True)      # (H, 1)
        scale = gamma * jax.lax.rsqrt(var + eps)             # EUP rsqrt
        return jnp.maximum(hc * scale + beta, 0.0)

    # FC1 -> BN1 -> ReLU.  (FC1 bias is exactly cancelled by BN mean-subtract.)
    x = jnp.dot(w1_ref[...], obs_ref[...], preferred_element_type=jnp.float32)
    x = bn_relu(x, gb1_ref[...])

    # Middle layers (statically unrolled; L is small).
    # TODO(synk): switch to lax.fori_loop with dynamic wm_ref[l] if L grows
    # past ~8 to keep vreg live ranges bounded.
    for l in range(num_layers):
        h = jnp.dot(wm_ref[l], x, preferred_element_type=jnp.float32)
        x = bn_relu(h, gbm_ref[l])

    # FC_out: H -> 1 as a VPU mul + sublane reduction; the result (1, B) is a
    # lane-dense output row (unmasked store for large B).  wo_ref is (H, 1);
    # bo lives in SMEM and is read as a scalar.
    out_ref[...] = (jnp.sum(x * wo_ref[...], axis=0, keepdims=True)
                    + bo_ref[0, 0])


def make_params(key, num_states, hidden_dim, num_hidden_layers):
    """Deterministic kaiming_normal(fan_in, relu) init, biases = 0,
    BN gamma = 1, beta = 0.  Weights stored in PyTorch (out, in) layout."""
    ks = jax.random.split(key, 2 + num_hidden_layers)

    def kaiming(k, fan_out, fan_in):
        std = jnp.sqrt(2.0 / fan_in)
        return jax.random.normal(k, (fan_out, fan_in), jnp.float32) * std

    w1 = kaiming(ks[0], hidden_dim, num_states)                           # (H,S)
    b1 = jnp.zeros((hidden_dim,), jnp.float32)
    g1 = jnp.ones((hidden_dim,), jnp.float32)
    be1 = jnp.zeros((hidden_dim,), jnp.float32)

    wm = jnp.stack([kaiming(ks[1 + l], hidden_dim, hidden_dim)
                    for l in range(num_hidden_layers)], axis=0)           # (L,H,H)
    bm = jnp.zeros((num_hidden_layers, hidden_dim), jnp.float32)          # (L,H)
    gm = jnp.ones((num_hidden_layers, hidden_dim), jnp.float32)
    bem = jnp.zeros((num_hidden_layers, hidden_dim), jnp.float32)

    wo = kaiming(ks[1 + num_hidden_layers], 1, hidden_dim)                # (1,H)
    bo = jnp.zeros((1,), jnp.float32)

    return dict(w1=w1, b1=b1, g1=g1, be1=be1,
                wm=wm, bm=bm, gm=gm, bem=bem, wo=wo, bo=bo)


def v_forward(obs, params, num_hidden_layers, eps=1e-5):
    batch = obs.shape[0]
    obs_t = obs.T                                                          # (S,B)
    # Pack BN affine params with channels on sublanes: (H,2) and (L,H,2).
    gb1 = jnp.stack([params["g1"], params["be1"]], axis=1)                 # (H,2)
    gbm = jnp.stack([params["gm"], params["bem"]], axis=2)                 # (L,H,2)
    wo_col = params["wo"].T                                                # (H,1)
    bo = params["bo"].reshape(1, 1)                                        # (1,1)

    vmem = pl.BlockSpec(memory_space=pltpu.MemorySpace.VMEM)
    smem = pl.BlockSpec(memory_space=pltpu.MemorySpace.SMEM)

    out_t = pl.pallas_call(
        functools.partial(v_kernel, num_layers=num_hidden_layers, eps=eps),
        out_shape=jax.ShapeDtypeStruct((1, batch), jnp.float32),
        in_specs=[vmem, vmem, vmem, vmem, vmem, vmem, smem],
        out_specs=vmem,
    )(obs_t, params["w1"], gb1, params["wm"], gbm, wo_col, bo)
    return out_t.T                                                         # (B,1)


def v_forward_ref(obs, params, num_hidden_layers, eps=1e-5):
    """Pure-JAX reference mirroring the PyTorch module exactly (training-mode
    BN, Linear biases included — the kernel drops them because BN cancels
    them; this reference proves that fold is exact)."""
    def bn_relu(h, gamma, beta):
        mean = jnp.mean(h, axis=0, keepdims=True)
        var = jnp.mean(jnp.square(h - mean), axis=0, keepdims=True)
        return jnp.maximum((h - mean) / jnp.sqrt(var + eps) * gamma + beta, 0.0)

    x = obs @ params["w1"].T + params["b1"]
    x = bn_relu(x, params["g1"], params["be1"])
    for l in range(num_hidden_layers):
        h = x @ params["wm"][l].T + params["bm"][l]
        x = bn_relu(h, params["gm"][l], params["bem"][l])
    return x @ params["wo"].T + params["bo"]


if __name__ == "__main__":
    BATCH = 8
    NUM_STATES = 16
    HIDDEN_DIM = 32
    NUM_HIDDEN_LAYERS = 2

    key = jax.random.PRNGKey(0)
    k_obs, k_par, k_b1, k_bm = jax.random.split(key, 4)
    obs = jax.random.normal(k_obs, (BATCH, NUM_STATES), jnp.float32)
    params = make_params(k_par, NUM_STATES, HIDDEN_DIM, NUM_HIDDEN_LAYERS)

    # Perturb the pre-BN Linear biases to nonzero values: the kernel never
    # reads them (training-mode BN cancels them exactly), and the allclose
    # check against the full reference verifies that optimization.
    params["b1"] = 0.1 * jax.random.normal(k_b1, params["b1"].shape, jnp.float32)
    params["bm"] = 0.1 * jax.random.normal(k_bm, params["bm"].shape, jnp.float32)

    out = v_forward(obs, params, NUM_HIDDEN_LAYERS)
    out = jax.block_until_ready(out)

    ref = v_forward_ref(obs, params, NUM_HIDDEN_LAYERS)
    assert out.shape == (BATCH, 1)
    assert jnp.allclose(out, ref, atol=1e-4, rtol=1e-4), (out, ref)

    print("KERNEL_OK")
</pallas_src>

<mosaic_0001>
module attributes {stable_mosaic.version = 11 : i64} {
  func.func @v_kernel(%arg0: memref<16x8xf32, #tpu.memory_space<vmem>>, %arg1: memref<32x16xf32, #tpu.memory_space<vmem>>, %arg2: memref<32x2xf32, #tpu.memory_space<vmem>>, %arg3: memref<2x32x32xf32, #tpu.memory_space<vmem>>, %arg4: memref<2x32x2xf32, #tpu.memory_space<vmem>>, %arg5: memref<32x1xf32, #tpu.memory_space<vmem>>, %arg6: memref<1x1xf32, #tpu.memory_space<smem>>, %arg7: memref<1x8xf32, #tpu.memory_space<vmem>>) attributes {dimension_semantics = [], scalar_prefetch = 0 : i64, scratch_operands = 0 : i64, tpu.core_type = #tpu.core_type<tc>} {
    %c0 = arith.constant 0 : index
    %c0_0 = arith.constant 0 : index
    %0 = vector.load %arg1[%c0, %c0_0] : memref<32x16xf32, #tpu.memory_space<vmem>>, vector<32x16xf32>
    %c0_1 = arith.constant 0 : index
    %c0_2 = arith.constant 0 : index
    %1 = vector.load %arg0[%c0_1, %c0_2] : memref<16x8xf32, #tpu.memory_space<vmem>>, vector<16x8xf32>
    %cst = arith.constant dense<0.000000e+00> : vector<32x8xf32>
    %2 = tpu.matmul %0, %1, %cst {dimension_numbers = #tpu.dot_dimension_numbers<[1], [0], [0], [1], [0, 0, 1, 1], [], []>} : vector<32x16xf32>, vector<16x8xf32>, vector<32x8xf32> -> vector<32x8xf32>
    %c0_3 = arith.constant 0 : index
    %c0_4 = arith.constant 0 : index
    %3 = vector.load %arg2[%c0_3, %c0_4] : memref<32x2xf32, #tpu.memory_space<vmem>>, vector<32x2xf32>
    %4 = vector.extract_strided_slice %3 {offsets = [0, 0], sizes = [32, 1], strides = [1, 1]} : vector<32x2xf32> to vector<32x1xf32>
    %5 = vector.extract_strided_slice %3 {offsets = [0, 1], sizes = [32, 1], strides = [1, 1]} : vector<32x2xf32> to vector<32x1xf32>
    %cst_5 = arith.constant dense<0.000000e+00> : vector<32xf32>
    %6 = vector.multi_reduction <add>, %2, %cst_5 [1] : vector<32x8xf32> to vector<32xf32>
    %7 = vector.shape_cast %6 : vector<32xf32> to vector<32x1xf32>
    %cst_6 = arith.constant 8.000000e+00 : f32
    %8 = vector.broadcast %cst_6 : f32 to vector<32x1xf32>
    %9 = arith.divf %7, %8 : vector<32x1xf32>
    %10 = vector.broadcast %9 : vector<32x1xf32> to vector<32x8xf32>
    %11 = arith.subf %2, %10 : vector<32x8xf32>
    %12 = arith.mulf %11, %11 : vector<32x8xf32>
    %cst_7 = arith.constant dense<0.000000e+00> : vector<32xf32>
    %13 = vector.multi_reduction <add>, %12, %cst_7 [1] : vector<32x8xf32> to vector<32xf32>
    %14 = vector.shape_cast %13 : vector<32xf32> to vector<32x1xf32>
    %cst_8 = arith.constant 8.000000e+00 : f32
    %15 = vector.broadcast %cst_8 : f32 to vector<32x1xf32>
    %16 = arith.divf %14, %15 : vector<32x1xf32>
    %cst_9 = arith.constant 9.99999974E-6 : f32
    %17 = vector.broadcast %cst_9 : f32 to vector<32x1xf32>
    %18 = arith.addf %16, %17 : vector<32x1xf32>
    %19 = math.rsqrt %18 : vector<32x1xf32>
    %20 = arith.mulf %4, %19 : vector<32x1xf32>
    %21 = vector.broadcast %20 : vector<32x1xf32> to vector<32x8xf32>
    %22 = arith.mulf %11, %21 : vector<32x8xf32>
    %23 = vector.broadcast %5 : vector<32x1xf32> to vector<32x8xf32>
    %24 = arith.addf %22, %23 : vector<32x8xf32>
    %cst_10 = arith.constant 0.000000e+00 : f32
    %25 = vector.broadcast %cst_10 : f32 to vector<32x8xf32>
    %26 = arith.maximumf %24, %25 : vector<32x8xf32>
    %c0_11 = arith.constant 0 : index
    %c0_12 = arith.constant 0 : index
    %c0_13 = arith.constant 0 : index
    %27 = vector.load %arg3[%c0_11, %c0_12, %c0_13] : memref<2x32x32xf32, #tpu.memory_space<vmem>>, vector<1x32x32xf32>
    %28 = vector.shape_cast %27 : vector<1x32x32xf32> to vector<32x32xf32>
    %cst_14 = arith.constant dense<0.000000e+00> : vector<32x8xf32>
    %29 = tpu.matmul %28, %26, %cst_14 {dimension_numbers = #tpu.dot_dimension_numbers<[1], [0], [0], [1], [0, 0, 1, 1], [], []>} : vector<32x32xf32>, vector<32x8xf32>, vector<32x8xf32> -> vector<32x8xf32>
    %c0_15 = arith.constant 0 : index
    %c0_16 = arith.constant 0 : index
    %c0_17 = arith.constant 0 : index
    %30 = vector.load %arg4[%c0_15, %c0_16, %c0_17] : memref<2x32x2xf32, #tpu.memory_space<vmem>>, vector<1x32x2xf32>
    %31 = vector.shape_cast %30 : vector<1x32x2xf32> to vector<32x2xf32>
    %32 = vector.extract_strided_slice %31 {offsets = [0, 0], sizes = [32, 1], strides = [1, 1]} : vector<32x2xf32> to vector<32x1xf32>
    %33 = vector.extract_strided_slice %31 {offsets = [0, 1], sizes = [32, 1], strides = [1, 1]} : vector<32x2xf32> to vector<32x1xf32>
    %cst_18 = arith.constant dense<0.000000e+00> : vector<32xf32>
    %34 = vector.multi_reduction <add>, %29, %cst_18 [1] : vector<32x8xf32> to vector<32xf32>
    %35 = vector.shape_cast %34 : vector<32xf32> to vector<32x1xf32>
    %cst_19 = arith.constant 8.000000e+00 : f32
    %36 = vector.broadcast %cst_19 : f32 to vector<32x1xf32>
    %37 = arith.divf %35, %36 : vector<32x1xf32>
    %38 = vector.broadcast %37 : vector<32x1xf32> to vector<32x8xf32>
    %39 = arith.subf %29, %38 : vector<32x8xf32>
    %40 = arith.mulf %39, %39 : vector<32x8xf32>
    %cst_20 = arith.constant dense<0.000000e+00> : vector<32xf32>
    %41 = vector.multi_reduction <add>, %40, %cst_20 [1] : vector<32x8xf32> to vector<32xf32>
    %42 = vector.shape_cast %41 : vector<32xf32> to vector<32x1xf32>
    %cst_21 = arith.constant 8.000000e+00 : f32
    %43 = vector.broadcast %cst_21 : f32 to vector<32x1xf32>
    %44 = arith.divf %42, %43 : vector<32x1xf32>
    %cst_22 = arith.constant 9.99999974E-6 : f32
    %45 = vector.broadcast %cst_22 : f32 to vector<32x1xf32>
    %46 = arith.addf %44, %45 : vector<32x1xf32>
    %47 = math.rsqrt %46 : vector<32x1xf32>
    %48 = arith.mulf %32, %47 : vector<32x1xf32>
    %49 = vector.broadcast %48 : vector<32x1xf32> to vector<32x8xf32>
    %50 = arith.mulf %39, %49 : vector<32x8xf32>
    %51 = vector.broadcast %33 : vector<32x1xf32> to vector<32x8xf32>
    %52 = arith.addf %50, %51 : vector<32x8xf32>
    %cst_23 = arith.constant 0.000000e+00 : f32
    %53 = vector.broadcast %cst_23 : f32 to vector<32x8xf32>
    %54 = arith.maximumf %52, %53 : vector<32x8xf32>
    %c1 = arith.constant 1 : index
    %c0_24 = arith.constant 0 : index
    %c0_25 = arith.constant 0 : index
    %55 = vector.load %arg3[%c1, %c0_24, %c0_25] : memref<2x32x32xf32, #tpu.memory_space<vmem>>, vector<1x32x32xf32>
    %56 = vector.shape_cast %55 : vector<1x32x32xf32> to vector<32x32xf32>
    %cst_26 = arith.constant dense<0.000000e+00> : vector<32x8xf32>
    %57 = tpu.matmul %56, %54, %cst_26 {dimension_numbers = #tpu.dot_dimension_numbers<[1], [0], [0], [1], [0, 0, 1, 1], [], []>} : vector<32x32xf32>, vector<32x8xf32>, vector<32x8xf32> -> vector<32x8xf32>
    %c1_27 = arith.constant 1 : index
    %c0_28 = arith.constant 0 : index
    %c0_29 = arith.constant 0 : index
    %58 = vector.load %arg4[%c1_27, %c0_28, %c0_29] : memref<2x32x2xf32, #tpu.memory_space<vmem>>, vector<1x32x2xf32>
    %59 = vector.shape_cast %58 : vector<1x32x2xf32> to vector<32x2xf32>
    %60 = vector.extract_strided_slice %59 {offsets = [0, 0], sizes = [32, 1], strides = [1, 1]} : vector<32x2xf32> to vector<32x1xf32>
    %61 = vector.extract_strided_slice %59 {offsets = [0, 1], sizes = [32, 1], strides = [1, 1]} : vector<32x2xf32> to vector<32x1xf32>
    %cst_30 = arith.constant dense<0.000000e+00> : vector<32xf32>
    %62 = vector.multi_reduction <add>, %57, %cst_30 [1] : vector<32x8xf32> to vector<32xf32>
    %63 = vector.shape_cast %62 : vector<32xf32> to vector<32x1xf32>
    %cst_31 = arith.constant 8.000000e+00 : f32
    %64 = vector.broadcast %cst_31 : f32 to vector<32x1xf32>
    %65 = arith.divf %63, %64 : vector<32x1xf32>
    %66 = vector.broadcast %65 : vector<32x1xf32> to vector<32x8xf32>
    %67 = arith.subf %57, %66 : vector<32x8xf32>
    %68 = arith.mulf %67, %67 : vector<32x8xf32>
    %cst_32 = arith.constant dense<0.000000e+00> : vector<32xf32>
    %69 = vector.multi_reduction <add>, %68, %cst_32 [1] : vector<32x8xf32> to vector<32xf32>
    %70 = vector.shape_cast %69 : vector<32xf32> to vector<32x1xf32>
    %cst_33 = arith.constant 8.000000e+00 : f32
    %71 = vector.broadcast %cst_33 : f32 to vector<32x1xf32>
    %72 = arith.divf %70, %71 : vector<32x1xf32>
    %cst_34 = arith.constant 9.99999974E-6 : f32
    %73 = vector.broadcast %cst_34 : f32 to vector<32x1xf32>
    %74 = arith.addf %72, %73 : vector<32x1xf32>
    %75 = math.rsqrt %74 : vector<32x1xf32>
    %76 = arith.mulf %60, %75 : vector<32x1xf32>
    %77 = vector.broadcast %76 : vector<32x1xf32> to vector<32x8xf32>
    %78 = arith.mulf %67, %77 : vector<32x8xf32>
    %79 = vector.broadcast %61 : vector<32x1xf32> to vector<32x8xf32>
    %80 = arith.addf %78, %79 : vector<32x8xf32>
    %cst_35 = arith.constant 0.000000e+00 : f32
    %81 = vector.broadcast %cst_35 : f32 to vector<32x8xf32>
    %82 = arith.maximumf %80, %81 : vector<32x8xf32>
    %c0_36 = arith.constant 0 : index
    %c0_37 = arith.constant 0 : index
    %83 = vector.load %arg5[%c0_36, %c0_37] : memref<32x1xf32, #tpu.memory_space<vmem>>, vector<32x1xf32>
    %84 = vector.broadcast %83 : vector<32x1xf32> to vector<32x8xf32>
    %85 = arith.mulf %82, %84 : vector<32x8xf32>
    %cst_38 = arith.constant dense<0.000000e+00> : vector<8xf32>
    %86 = vector.multi_reduction <add>, %85, %cst_38 [0] : vector<32x8xf32> to vector<8xf32>
    %87 = vector.shape_cast %86 : vector<8xf32> to vector<1x8xf32>
    %c0_39 = arith.constant 0 : index
    %c0_40 = arith.constant 0 : index
    %88 = memref.load %arg6[%c0_39, %c0_40] : memref<1x1xf32, #tpu.memory_space<smem>>
    %89 = vector.broadcast %88 : f32 to vector<1x8xf32>
    %90 = arith.addf %87, %89 : vector<1x8xf32>
    %c0_41 = arith.constant 0 : index
    %c0_42 = arith.constant 0 : index
    %91 = vector.load %arg7[%c0_41, %c0_42] : memref<1x8xf32, #tpu.memory_space<vmem>>, vector<1x8xf32>
    tpu.vector_store %arg7[%c0_41, %c0_42], %90 {strides = array<i32>} : memref<1x8xf32, #tpu.memory_space<vmem>>, vector<1x8xf32>,
    return
  }
}

</mosaic_0001>

<llo_original>
// kernel: tpu_custom_call.1
$region0: #{tpu_custom_call.1}
  #allocation0 [shape = 'u32[]', space=smem, size = 0x4, offset = 0x4, fixed_abs, tag = 'smem constant byte address 0x4 - core index']
  #allocation1 [shape = 'u32[72,128]{1,0:T(1,128)}', space=vmem, size = 0x9000, scoped, tag = 'internal scratch']
  #allocation2 [shape = 'f32[1,1]{1,0:T(1,128)S(6)}', space=smem, size = 0x200, scoped, tag = 'scoped memory for tpu_custom_call.1']
  %s0 = inlined_call_operand.vmem [shape: f32[16,8], index: 0, kind: input, shape index: {}]
  %s1 = inlined_call_operand.vmem [shape: f32[32,16], index: 1, kind: input, shape index: {}]
  %s2 = inlined_call_operand.vmem [shape: f32[32,2], index: 2, kind: input, shape index: {}]
  %s3 = inlined_call_operand.vmem [shape: f32[2,32,32], index: 3, kind: input, shape index: {}]
  %s4 = inlined_call_operand.vmem [shape: f32[2,32,2], index: 4, kind: input, shape index: {}]
  %s5 = inlined_call_operand.vmem [shape: f32[32,1], index: 5, kind: input, shape index: {}]
  %s6 = inlined_call_operand.<no memory space> [shape: f32[1,1], index: 6, kind: input, shape index: {}]
  %s7 = inlined_call_operand.hbm [shape: f32[1,8], index: 7, kind: output, shape index: {}]
  %s8 = sld [smem:[#allocation0]]
  $region38: #{tpu_custom_call.1} parent=0
    _
  %s10 = ssub.s32 1, %s8
  %s11 = scalar_select 0, %s10, %s8
  %12 = sst [smem:[#allocation2]] %s6
  $region1: #{tpu_custom_call.1} parent=0
    #allocation3 [shape = 'u8[512]{0}', space=vmem, size = 0x400, scoped, tag = 'output window, operand 0, single buffered']
    #allocation4 [shape = 's32[1]{0}', space=sflag, size = 0x4, scoped, tag = 'scoped memory for tpu_custom_call.1']
    %13 = vsyncpa [#allocation4], 0
    // Predicated region
    $region2: #{tpu_custom_call.1} parent=1 // pred_check
      _
    $region3: #{tpu_custom_call.1} parent=1 // pred_check_branch
      %15 = sbr.rel (0) target = $region5
    $region4: #{tpu_custom_call.1} parent=1 // pred_region
      _
    $region5: #{tpu_custom_call.1} parent=1 // pred_fallthru
      _
    // Predicated region
    $region6: #{tpu_custom_call.1} parent=1 // pred_check
      _
    $region7: #{tpu_custom_call.1} parent=1 // pred_check_branch
      %17 = sbr.rel (0) target = $region9
    $region8: #{tpu_custom_call.1} parent=1 // pred_region
      _
    $region9: #{tpu_custom_call.1} parent=1 // pred_fallthru
      _
    // Predicated region
    $region10: #{tpu_custom_call.1} parent=1 // pred_check
      _
    $region11: #{tpu_custom_call.1} parent=1 // pred_check_branch
      %19 = sbr.rel (0) target = $region13
    $region12: #{tpu_custom_call.1} parent=1 // pred_region
      _
    $region13: #{tpu_custom_call.1} parent=1 // pred_fallthru
      _
    // Predicated region
    $region14: #{tpu_custom_call.1} parent=1 // pred_check
      _
    $region15: #{tpu_custom_call.1} parent=1 // pred_check_branch
      %21 = sbr.rel (0) target = $region17
    $region16: #{tpu_custom_call.1} parent=1 // pred_region
      _
    $region17: #{tpu_custom_call.1} parent=1 // pred_fallthru
      _
    // Predicated region
    $region18: #{tpu_custom_call.1} parent=1 // pred_check
      _
    $region19: #{tpu_custom_call.1} parent=1 // pred_check_branch
      %23 = sbr.rel (0) target = $region21
    $region20: #{tpu_custom_call.1} parent=1 // pred_region
      _
    $region21: #{tpu_custom_call.1} parent=1 // pred_fallthru
      _
    // Predicated region
    $region22: #{tpu_custom_call.1} parent=1 // pred_check
      _
    $region23: #{tpu_custom_call.1} parent=1 // pred_check_branch
      %25 = sbr.rel (0) target = $region25
    $region24: #{tpu_custom_call.1} parent=1 // pred_region
      _
    $region25: #{tpu_custom_call.1} parent=1 // pred_fallthru
      _
    // Predicated region
    $region26: #{tpu_custom_call.1} parent=1 // pred_check
      _
    $region27: #{tpu_custom_call.1} parent=1 // pred_check_branch
      %27 = sbr.rel (0) target = $region29
    $region28: #{tpu_custom_call.1} parent=1 // pred_region
      _
    $region29: #{tpu_custom_call.1} parent=1 // pred_fallthru
      _
    %v28 = vld [vmem:[%s1] sm:$0xff]
    %v29 = vld [vmem:[%s1 + $0x8] sm:$0xff]
    %v30 = vld [vmem:[%s1 + $0x10] sm:$0xff]
    %v31 = vld [vmem:[%s1 + $0x18] sm:$0xff]
    %v32 = vld [vmem:[%s0] sm:$0xff]
    %v33 = vld [vmem:[%s0 + $0x8] sm:$0xff]
    %vm34 = vcmask 130048
    %v36 = vsel %vm34, %v28, 0
    %v39 = vsel %vm34, %v29, 0
    %v42 = vsel %vm34, %v30, 0
    %v45 = vsel %vm34, %v31, 0
    %47 = vmatpush.msra.mxu0 0.0
    %48 = vmatpush.msra.mxu0 0.0
    %49 = vmatpush.msra.mxu0 0.0
    %50 = vmatpush.msra.mxu0 0.0
    %51 = vmatpush.msra.mxu0 0.0
    %52 = vmatpush.msra.mxu0 0.0
    %53 = vmatpush.msra.mxu0 0.0
    %54 = vmatpush.msra.mxu0 0.0
    %55 = vmatpush.msra.mxu0 0.0
    %56 = vmatpush.msra.mxu0 0.0
    %57 = vmatpush.msra.mxu0 0.0
    %58 = vmatpush.msra.mxu0 0.0
    %59 = vmatpush.msra.mxu0 0.0
    %60 = vmatpush.msra.mxu0 0.0
    %61 = vmatpush.msra.mxu0 %v33
    %62 = vmatpush.msra.mxu0 %v32
    %63 = vmatmul.f32.gmra.mxu0 %v36
    %v64 = vpop.f32.mrf.mxu0
    %v65 = vadd.f32 0.0, %v64
    %66 = vmatmul.f32.gmra.mxu0 %v39
    %v67 = vpop.f32.mrf.mxu0
    %v68 = vadd.f32 0.0, %v67
    %69 = vmatmul.f32.gmra.mxu0 %v42
    %v70 = vpop.f32.mrf.mxu0
    %v71 = vadd.f32 0.0, %v70
    %72 = vmatmul.f32.gmra.mxu0 %v45
    %v73 = vpop.f32.mrf.mxu0
    %v74 = vadd.f32 0.0, %v73
    %75 = vdwg.mxu0
    %v76 = vld [vmem:[%s2] sm:$0xff]
    %v77 = vld [vmem:[%s2 + $0x8] sm:$0xff]
    %v78 = vld [vmem:[%s2 + $0x10] sm:$0xff]
    %v79 = vld [vmem:[%s2 + $0x18] sm:$0xff]
    %vm80 = vcmask 64512
    %v81 = vsel %vm80, %v65, 0.0
    %82 = vadd.xlane.f32.xlu0 %v81
    %v83 = vpop.xlane.xlu0 %82
    %v84 = vsel %vm80, %v68, 0.0
    %85 = vadd.xlane.f32.xlu0 %v84
    %v86 = vpop.xlane.xlu0 %85
    %v87 = vsel %vm80, %v71, 0.0
    %88 = vadd.xlane.f32.xlu0 %v87
    %v89 = vpop.xlane.xlu0 %88
    %v90 = vsel %vm80, %v74, 0.0
    %91 = vadd.xlane.f32.xlu0 %v90
    %v92 = vpop.xlane.xlu0 %91
    %v93 = vrcp.pop 8.0
    %v94 = vmul.f32 8.0, %v93
    %v95 = vsub.f32 1.0, %v94
    %v96 = vmul.f32 %v93, %v95
    %v97 = vadd.f32 %v93, %v96
    %vm98 = vweird.f32 %v93
    %v99 = vsel %vm98, %v93, %v97
    %v100 = vmul.f32 %v83, %v99
    %v101 = vmul.f32 %v86, %v99
    %v102 = vmul.f32 %v89, %v99
    %v103 = vmul.f32 %v92, %v99
    %v104 = vsub.f32 %v65, %v100
    %v105 = vsub.f32 %v68, %v101
    %v106 = vsub.f32 %v71, %v102
    %v107 = vsub.f32 %v74, %v103
    %v108 = vmul.f32 %v104, %v104
    %v109 = vmul.f32 %v105, %v105
    %v110 = vmul.f32 %v106, %v106
    %v111 = vmul.f32 %v107, %v107
    %v112 = vsel %vm80, %v108, 0.0
    %113 = vadd.xlane.f32.xlu0 %v112
    %v114 = vpop.xlane.xlu0 %113
    %v115 = vsel %vm80, %v109, 0.0
    %116 = vadd.xlane.f32.xlu0 %v115
    %v117 = vpop.xlane.xlu0 %116
    %v118 = vsel %vm80, %v110, 0.0
    %119 = vadd.xlane.f32.xlu0 %v118
    %v120 = vpop.xlane.xlu0 %119
    %v121 = vsel %vm80, %v111, 0.0
    %122 = vadd.xlane.f32.xlu0 %v121
    %v123 = vpop.xlane.xlu0 %122
    %v124 = vmul.f32 %v114, %v99
    %v125 = vmul.f32 %v117, %v99
    %v126 = vmul.f32 %v120, %v99
    %v127 = vmul.f32 %v123, %v99
    %v128 = vadd.f32 %v124, 1e-05
    %v129 = vadd.f32 %v125, 1e-05
    %v130 = vadd.f32 %v126, 1e-05
    %v131 = vadd.f32 %v127, 1e-05
    %v132 = vrsqrt.pop %v128
    %v133 = vmul.f32 %v132, %v128
    %v134 = vmul.f32 %v133, %v132
    %v135 = vmul.f32 0.5, %v134
    %v136 = vsub.f32 1.5, %v135
    %v137 = vmul.f32 %v132, %v136
    %vm138 = vweird.f32 %v128
    %vm139 = vweird.f32 %v132
    %vm140 = vmor %vm138, %vm139
    %v141 = vsel %vm140, %v132, %v137
    %v142 = vrsqrt.pop %v129
    %v143 = vmul.f32 %v142, %v129
    %v144 = vmul.f32 %v143, %v142
    %v145 = vmul.f32 0.5, %v144
    %v146 = vsub.f32 1.5, %v145
    %v147 = vmul.f32 %v142, %v146
    %vm148 = vweird.f32 %v129
    %vm149 = vweird.f32 %v142
    %vm150 = vmor %vm148, %vm149
    %v151 = vsel %vm150, %v142, %v147
    %v152 = vrsqrt.pop %v130
    %v153 = vmul.f32 %v152, %v130
    %v154 = vmul.f32 %v153, %v152
    %v155 = vmul.f32 0.5, %v154
    %v156 = vsub.f32 1.5, %v155
    %v157 = vmul.f32 %v152, %v156
    %vm158 = vweird.f32 %v130
    %vm159 = vweird.f32 %v152
    %vm160 = vmor %vm158, %vm159
    %v161 = vsel %vm160, %v152, %v157
    %v162 = vrsqrt.pop %v131
    %v163 = vmul.f32 %v162, %v131
    %v164 = vmul.f32 %v163, %v162
    %v165 = vmul.f32 0.5, %v164
    %v166 = vsub.f32 1.5, %v165
    %v167 = vmul.f32 %v162, %v166
    %vm168 = vweird.f32 %v131
    %vm169 = vweird.f32 %v162
    %vm170 = vmor %vm168, %vm169
    %v171 = vsel %vm170, %v162, %v167
    %v172 = vmul.f32 %v76, %v141
    %v173 = vmul.f32 %v77, %v151
    %v174 = vmul.f32 %v78, %v161
    %v175 = vmul.f32 %v79, %v171
    %177 = vset.pattern.permute.xlu0 0
    %178 = vperm.xlu0 %177, %v172
    %v179 = vpop.permute.xlu0 %178
    %182 = vset.pattern.permute.xlu0 0
    %183 = vperm.xlu0 %182, %v173
    %v184 = vpop.permute.xlu0 %183
    %187 = vset.pattern.permute.xlu0 0
    %188 = vperm.xlu0 %187, %v174
    %v189 = vpop.permute.xlu0 %188
    %192 = vset.pattern.permute.xlu0 0
    %193 = vperm.xlu0 %192, %v175
    %v194 = vpop.permute.xlu0 %193
    %v196 = vmul.f32 %v104, %v179
    %v197 = vmul.f32 %v105, %v184
    %v198 = vmul.f32 %v106, %v189
    %v199 = vmul.f32 %v107, %v194
    %201 = vset.pattern.permute.xlu0 1
    %202 = vperm.xlu0 %201, %v76
    %v203 = vpop.permute.xlu0 %202
    %206 = vset.pattern.permute.xlu0 1
    %207 = vperm.xlu0 %206, %v77
    %v208 = vpop.permute.xlu0 %207
    %211 = vset.pattern.permute.xlu0 1
    %212 = vperm.xlu0 %211, %v78
    %v213 = vpop.permute.xlu0 %212
    %216 = vset.pattern.permute.xlu0 1
    %217 = vperm.xlu0 %216, %v79
    %v218 = vpop.permute.xlu0 %217
    %v220 = vadd.f32 %v196, %v203
    %v221 = vadd.f32 %v197, %v208
    %v222 = vadd.f32 %v198, %v213
    %v223 = vadd.f32 %v199, %v218
    %v224 = vmax.f32 %v220, 0.0
    %v225 = vmax.f32 %v221, 0.0
    %v226 = vmax.f32 %v222, 0.0
    %v227 = vmax.f32 %v223, 0.0
    %v228 = vld [vmem:[%s3] sm:$0xff]
    %v229 = vld [vmem:[%s3 + $0x8] sm:$0xff]
    %v230 = vld [vmem:[%s3 + $0x10] sm:$0xff]
    %v231 = vld [vmem:[%s3 + $0x18] sm:$0xff]
    %vm232 = vcmask 261120
    %v234 = vsel %vm232, %v228, 0
    %v237 = vsel %vm232, %v229, 0
    %v240 = vsel %vm232, %v230, 0
    %v243 = vsel %vm232, %v231, 0
    %245 = vmatpush.msra.mxu0 0.0
    %246 = vmatpush.msra.mxu0 0.0
    %247 = vmatpush.msra.mxu0 0.0
    %248 = vmatpush.msra.mxu0 0.0
    %249 = vmatpush.msra.mxu0 0.0
    %250 = vmatpush.msra.mxu0 0.0
    %251 = vmatpush.msra.mxu0 0.0
    %252 = vmatpush.msra.mxu0 0.0
    %253 = vmatpush.msra.mxu0 0.0
    %254 = vmatpush.msra.mxu0 0.0
    %255 = vmatpush.msra.mxu0 0.0
    %256 = vmatpush.msra.mxu0 0.0
    %257 = vmatpush.msra.mxu0 %v227
    %258 = vmatpush.msra.mxu0 %v226
    %259 = vmatpush.msra.mxu0 %v225
    %260 = vmatpush.msra.mxu0 %v224
    %261 = vmatmul.f32.gmra.mxu0 %v234
    %v262 = vpop.f32.mrf.mxu0
    %v263 = vadd.f32 0.0, %v262
    %264 = vmatmul.f32.gmra.mxu0 %v237
    %v265 = vpop.f32.mrf.mxu0
    %v266 = vadd.f32 0.0, %v265
    %267 = vmatmul.f32.gmra.mxu0 %v240
    %v268 = vpop.f32.mrf.mxu0
    %v269 = vadd.f32 0.0, %v268
    %270 = vmatmul.f32.gmra.mxu0 %v243
    %v271 = vpop.f32.mrf.mxu0
    %v272 = vadd.f32 0.0, %v271
    %273 = vdwg.mxu0
    %v274 = vld [vmem:[%s4] sm:$0xff]
    %v275 = vld [vmem:[%s4 + $0x8] sm:$0xff]
    %v276 = vld [vmem:[%s4 + $0x10] sm:$0xff]
    %v277 = vld [vmem:[%s4 + $0x18] sm:$0xff]
    %v278 = vsel %vm80, %v263, 0.0
    %279 = vadd.xlane.f32.xlu0 %v278
    %v280 = vpop.xlane.xlu0 %279
    %v281 = vsel %vm80, %v266, 0.0
    %282 = vadd.xlane.f32.xlu0 %v281
    %v283 = vpop.xlane.xlu0 %282
    %v284 = vsel %vm80, %v269, 0.0
    %285 = vadd.xlane.f32.xlu0 %v284
    %v286 = vpop.xlane.xlu0 %285
    %v287 = vsel %vm80, %v272, 0.0
    %288 = vadd.xlane.f32.xlu0 %v287
    %v289 = vpop.xlane.xlu0 %288
    %v290 = vmul.f32 %v280, %v99
    %v291 = vmul.f32 %v283, %v99
    %v292 = vmul.f32 %v286, %v99
    %v293 = vmul.f32 %v289, %v99
    %v294 = vsub.f32 %v263, %v290
    %v295 = vsub.f32 %v266, %v291
    %v296 = vsub.f32 %v269, %v292
    %v297 = vsub.f32 %v272, %v293
    %v298 = vmul.f32 %v294, %v294
    %v299 = vmul.f32 %v295, %v295
    %v300 = vmul.f32 %v296, %v296
    %v301 = vmul.f32 %v297, %v297
    %v302 = vsel %vm80, %v298, 0.0
    %303 = vadd.xlane.f32.xlu0 %v302
    %v304 = vpop.xlane.xlu0 %303
    %v305 = vsel %vm80, %v299, 0.0
    %306 = vadd.xlane.f32.xlu0 %v305
    %v307 = vpop.xlane.xlu0 %306
    %v308 = vsel %vm80, %v300, 0.0
    %309 = vadd.xlane.f32.xlu0 %v308
    %v310 = vpop.xlane.xlu0 %309
    %v311 = vsel %vm80, %v301, 0.0
    %312 = vadd.xlane.f32.xlu0 %v311
    %v313 = vpop.xlane.xlu0 %312
    %v314 = vmul.f32 %v304, %v99
    %v315 = vmul.f32 %v307, %v99
    %v316 = vmul.f32 %v310, %v99
    %v317 = vmul.f32 %v313, %v99
    %v318 = vadd.f32 %v314, 1e-05
    %v319 = vadd.f32 %v315, 1e-05
    %v320 = vadd.f32 %v316, 1e-05
    %v321 = vadd.f32 %v317, 1e-05
    %v322 = vrsqrt.pop %v318
    %v323 = vmul.f32 %v322, %v318
    %v324 = vmul.f32 %v323, %v322
    %v325 = vmul.f32 0.5, %v324
    %v326 = vsub.f32 1.5, %v325
    %v327 = vmul.f32 %v322, %v326
    %vm328 = vweird.f32 %v318
    %vm329 = vweird.f32 %v322
    %vm330 = vmor %vm328, %vm329
    %v331 = vsel %vm330, %v322, %v327
    %v332 = vrsqrt.pop %v319
    %v333 = vmul.f32 %v332, %v319
    %v334 = vmul.f32 %v333, %v332
    %v335 = vmul.f32 0.5, %v334
    %v336 = vsub.f32 1.5, %v335
    %v337 = vmul.f32 %v332, %v336
    %vm338 = vweird.f32 %v319
    %vm339 = vweird.f32 %v332
    %vm340 = vmor %vm338, %vm339
    %v341 = vsel %vm340, %v332, %v337
    %v342 = vrsqrt.pop %v320
    %v343 = vmul.f32 %v342, %v320
    %v344 = vmul.f32 %v343, %v342
    %v345 = vmul.f32 0.5, %v344
    %v346 = vsub.f32 1.5, %v345
    %v347 = vmul.f32 %v342, %v346
    %vm348 = vweird.f32 %v320
    %vm349 = vweird.f32 %v342
    %vm350 = vmor %vm348, %vm349
    %v351 = vsel %vm350, %v342, %v347
    %v352 = vrsqrt.pop %v321
    %v353 = vmul.f32 %v352, %v321
    %v354 = vmul.f32 %v353, %v352
    %v355 = vmul.f32 0.5, %v354
    %v356 = vsub.f32 1.5, %v355
    %v357 = vmul.f32 %v352, %v356
    %vm358 = vweird.f32 %v321
    %vm359 = vweird.f32 %v352
    %vm360 = vmor %vm358, %vm359
    %v361 = vsel %vm360, %v352, %v357
    %v362 = vmul.f32 %v274, %v331
    %v363 = vmul.f32 %v275, %v341
    %v364 = vmul.f32 %v276, %v351
    %v365 = vmul.f32 %v277, %v361
    %367 = vset.pattern.permute.xlu0 0
    %368 = vperm.xlu0 %367, %v362
    %v369 = vpop.permute.xlu0 %368
    %372 = vset.pattern.permute.xlu0 0
    %373 = vperm.xlu0 %372, %v363
    %v374 = vpop.permute.xlu0 %373
    %377 = vset.pattern.permute.xlu0 0
    %378 = vperm.xlu0 %377, %v364
    %v379 = vpop.permute.xlu0 %378
    %382 = vset.pattern.permute.xlu0 0
    %383 = vperm.xlu0 %382, %v365
    %v384 = vpop.permute.xlu0 %383
    %v386 = vmul.f32 %v294, %v369
    %v387 = vmul.f32 %v295, %v374
    %v388 = vmul.f32 %v296, %v379
    %v389 = vmul.f32 %v297, %v384
    %391 = vset.pattern.permute.xlu0 1
    %392 = vperm.xlu0 %391, %v274
    %v393 = vpop.permute.xlu0 %392
    %396 = vset.pattern.permute.xlu0 1
    %397 = vperm.xlu0 %396, %v275
    %v398 = vpop.permute.xlu0 %397
    %401 = vset.pattern.permute.xlu0 1
    %402 = vperm.xlu0 %401, %v276
    %v403 = vpop.permute.xlu0 %402
    %406 = vset.pattern.permute.xlu0 1
    %407 = vperm.xlu0 %406, %v277
    %v408 = vpop.permute.xlu0 %407
    %v410 = vadd.f32 %v386, %v393
    %v411 = vadd.f32 %v387, %v398
    %v412 = vadd.f32 %v388, %v403
    %v413 = vadd.f32 %v389, %v408
    %v414 = vmax.f32 %v410, 0.0
    %v415 = vmax.f32 %v411, 0.0
    %v416 = vmax.f32 %v412, 0.0
    %v417 = vmax.f32 %v413, 0.0
    %s418 = scalar_lea.vmem %s3, 32
    %v419 = vld [vmem:[%s418] sm:$0xff]
    %v420 = vld [vmem:[%s418 + $0x8] sm:$0xff]
    %v421 = vld [vmem:[%s418 + $0x10] sm:$0xff]
    %v422 = vld [vmem:[%s418 + $0x18] sm:$0xff]
    %v424 = vsel %vm232, %v419, 0
    %v427 = vsel %vm232, %v420, 0
    %v430 = vsel %vm232, %v421, 0
    %v433 = vsel %vm232, %v422, 0
    %435 = vmatpush.msra.mxu0 0.0
    %436 = vmatpush.msra.mxu0 0.0
    %437 = vmatpush.msra.mxu0 0.0
    %438 = vmatpush.msra.mxu0 0.0
    %439 = vmatpush.msra.mxu0 0.0
    %440 = vmatpush.msra.mxu0 0.0
    %441 = vmatpush.msra.mxu0 0.0
    %442 = vmatpush.msra.mxu0 0.0
    %443 = vmatpush.msra.mxu0 0.0
    %444 = vmatpush.msra.mxu0 0.0
    %445 = vmatpush.msra.mxu0 0.0
    %446 = vmatpush.msra.mxu0 0.0
    %447 = vmatpush.msra.mxu0 %v417
    %448 = vmatpush.msra.mxu0 %v416
    %449 = vmatpush.msra.mxu0 %v415
    %450 = vmatpush.msra.mxu0 %v414
    %451 = vmatmul.f32.gmra.mxu0 %v424
    %v452 = vpop.f32.mrf.mxu0
    %v453 = vadd.f32 0.0, %v452
    %454 = vmatmul.f32.gmra.mxu0 %v427
    %v455 = vpop.f32.mrf.mxu0
    %v456 = vadd.f32 0.0, %v455
    %457 = vmatmul.f32.gmra.mxu0 %v430
    %v458 = vpop.f32.mrf.mxu0
    %v459 = vadd.f32 0.0, %v458
    %460 = vmatmul.f32.gmra.mxu0 %v433
    %v461 = vpop.f32.mrf.mxu0
    %v462 = vadd.f32 0.0, %v461
    %463 = vdwg.mxu0
    %s464 = scalar_lea.vmem %s4, 32
    %v465 = vld [vmem:[%s464] sm:$0xff]
    %v466 = vld [vmem:[%s464 + $0x8] sm:$0xff]
    %v467 = vld [vmem:[%s464 + $0x10] sm:$0xff]
    %v468 = vld [vmem:[%s464 + $0x18] sm:$0xff]
    %v469 = vsel %vm80, %v453, 0.0
    %470 = vadd.xlane.f32.xlu0 %v469
    %v471 = vpop.xlane.xlu0 %470
    %v472 = vsel %vm80, %v456, 0.0
    %473 = vadd.xlane.f32.xlu0 %v472
    %v474 = vpop.xlane.xlu0 %473
    %v475 = vsel %vm80, %v459, 0.0
    %476 = vadd.xlane.f32.xlu0 %v475
    %v477 = vpop.xlane.xlu0 %476
    %v478 = vsel %vm80, %v462, 0.0
    %479 = vadd.xlane.f32.xlu0 %v478
    %v480 = vpop.xlane.xlu0 %479
    %v481 = vmul.f32 %v471, %v99
    %v482 = vmul.f32 %v474, %v99
    %v483 = vmul.f32 %v477, %v99
    %v484 = vmul.f32 %v480, %v99
    %v485 = vsub.f32 %v453, %v481
    %v486 = vsub.f32 %v456, %v482
    %v487 = vsub.f32 %v459, %v483
    %v488 = vsub.f32 %v462, %v484
    %v489 = vmul.f32 %v485, %v485
    %v490 = vmul.f32 %v486, %v486
    %v491 = vmul.f32 %v487, %v487
    %v492 = vmul.f32 %v488, %v488
    %v493 = vsel %vm80, %v489, 0.0
    %494 = vadd.xlane.f32.xlu0 %v493
    %v495 = vpop.xlane.xlu0 %494
    %v496 = vsel %vm80, %v490, 0.0
    %497 = vadd.xlane.f32.xlu0 %v496
    %v498 = vpop.xlane.xlu0 %497
    %v499 = vsel %vm80, %v491, 0.0
    %500 = vadd.xlane.f32.xlu0 %v499
    %v501 = vpop.xlane.xlu0 %500
    %v502 = vsel %vm80, %v492, 0.0
    %503 = vadd.xlane.f32.xlu0 %v502
    %v504 = vpop.xlane.xlu0 %503
    %v505 = vmul.f32 %v495, %v99
    %v506 = vmul.f32 %v498, %v99
    %v507 = vmul.f32 %v501, %v99
    %v508 = vmul.f32 %v504, %v99
    %v509 = vadd.f32 %v505, 1e-05
    %v510 = vadd.f32 %v506, 1e-05
    %v511 = vadd.f32 %v507, 1e-05
    %v512 = vadd.f32 %v508, 1e-05
    %v513 = vrsqrt.pop %v509
    %v514 = vmul.f32 %v513, %v509
    %v515 = vmul.f32 %v514, %v513
    %v516 = vmul.f32 0.5, %v515
    %v517 = vsub.f32 1.5, %v516
    %v518 = vmul.f32 %v513, %v517
    %vm519 = vweird.f32 %v509
    %vm520 = vweird.f32 %v513
    %vm521 = vmor %vm519, %vm520
    %v522 = vsel %vm521, %v513, %v518
    %v523 = vrsqrt.pop %v510
    %v524 = vmul.f32 %v523, %v510
    %v525 = vmul.f32 %v524, %v523
    %v526 = vmul.f32 0.5, %v525
    %v527 = vsub.f32 1.5, %v526
    %v528 = vmul.f32 %v523, %v527
    %vm529 = vweird.f32 %v510
    %vm530 = vweird.f32 %v523
    %vm531 = vmor %vm529, %vm530
    %v532 = vsel %vm531, %v523, %v528
    %v533 = vrsqrt.pop %v511
    %v534 = vmul.f32 %v533, %v511
    %v535 = vmul.f32 %v534, %v533
    %v536 = vmul.f32 0.5, %v535
    %v537 = vsub.f32 1.5, %v536
    %v538 = vmul.f32 %v533, %v537
    %vm539 = vweird.f32 %v511
    %vm540 = vweird.f32 %v533
    %vm541 = vmor %vm539, %vm540
    %v542 = vsel %vm541, %v533, %v538
    %v543 = vrsqrt.pop %v512
    %v544 = vmul.f32 %v543, %v512
    %v545 = vmul.f32 %v544, %v543
    %v546 = vmul.f32 0.5, %v545
    %v547 = vsub.f32 1.5, %v546
    %v548 = vmul.f32 %v543, %v547
    %vm549 = vweird.f32 %v512
    %vm550 = vweird.f32 %v543
    %vm551 = vmor %vm549, %vm550
    %v552 = vsel %vm551, %v543, %v548
    %v553 = vmul.f32 %v465, %v522
    %v554 = vmul.f32 %v466, %v532
    %v555 = vmul.f32 %v467, %v542
    %v556 = vmul.f32 %v468, %v552
    %558 = vset.pattern.permute.xlu0 0
    %559 = vperm.xlu0 %558, %v553
    %v560 = vpop.permute.xlu0 %559
    %563 = vset.pattern.permute.xlu0 0
    %564 = vperm.xlu0 %563, %v554
    %v565 = vpop.permute.xlu0 %564
    %568 = vset.pattern.permute.xlu0 0
    %569 = vperm.xlu0 %568, %v555
    %v570 = vpop.permute.xlu0 %569
    %573 = vset.pattern.permute.xlu0 0
    %574 = vperm.xlu0 %573, %v556
    %v575 = vpop.permute.xlu0 %574
    %v577 = vmul.f32 %v485, %v560
    %v578 = vmul.f32 %v486, %v565
    %v579 = vmul.f32 %v487, %v570
    %v580 = vmul.f32 %v488, %v575
    %582 = vset.pattern.permute.xlu0 1
    %583 = vperm.xlu0 %582, %v465
    %v584 = vpop.permute.xlu0 %583
    %587 = vset.pattern.permute.xlu0 1
    %588 = vperm.xlu0 %587, %v466
    %v589 = vpop.permute.xlu0 %588
    %592 = vset.pattern.permute.xlu0 1
    %593 = vperm.xlu0 %592, %v467
    %v594 = vpop.permute.xlu0 %593
    %597 = vset.pattern.permute.xlu0 1
    %598 = vperm.xlu0 %597, %v468
    %v599 = vpop.permute.xlu0 %598
    %v601 = vadd.f32 %v577, %v584
    %v602 = vadd.f32 %v578, %v589
    %v603 = vadd.f32 %v579, %v594
    %v604 = vadd.f32 %v580, %v599
    %v605 = vmax.f32 %v601, 0.0
    %v606 = vmax.f32 %v602, 0.0
    %v607 = vmax.f32 %v603, 0.0
    %v608 = vmax.f32 %v604, 0.0
    %v609 = vld [vmem:[%s5] sm:$0xff]
    %v610 = vld [vmem:[%s5 + $0x8] sm:$0xff]
    %v611 = vld [vmem:[%s5 + $0x10] sm:$0xff]
    %v612 = vld [vmem:[%s5 + $0x18] sm:$0xff]
    %614 = vset.pattern.permute.xlu0 0
    %615 = vperm.xlu0 %614, %v609
    %v616 = vpop.permute.xlu0 %615
    %619 = vset.pattern.permute.xlu0 0
    %620 = vperm.xlu0 %619, %v610
    %v621 = vpop.permute.xlu0 %620
    %624 = vset.pattern.permute.xlu0 0
    %625 = vperm.xlu0 %624, %v611
    %v626 = vpop.permute.xlu0 %625
    %629 = vset.pattern.permute.xlu0 0
    %630 = vperm.xlu0 %629, %v612
    %v631 = vpop.permute.xlu0 %630
    %v633 = vmul.f32 %v605, %v616
    %v634 = vmul.f32 %v606, %v621
    %v635 = vmul.f32 %v607, %v626
    %v636 = vmul.f32 %v608, %v631
    %v637 = vsel %vm80, %v633, 0.0
    %v638 = vsel %vm80, %v634, 0.0
    %v639 = vadd.f32 %v637, %v638
    %v640 = vsel %vm80, %v635, 0.0
    %v641 = vadd.f32 %v639, %v640
    %v642 = vsel %vm80, %v636, 0.0
    %v643 = vadd.f32 %v641, %v642
    %v644 = vrot.slane %v643, 4
    %v645 = vadd.f32 %v643, %v644
    %v646 = vrot.slane %v645, 2
    %v647 = vadd.f32 %v645, %v646
    %v648 = vrot.slane %v647, 1
    %v649 = vadd.f32 %v647, %v648
    %s650 = sld [smem:[#allocation2]]
    %v651 = vstv %s650
    %v652 = vadd.f32 %v649, %v651
    %vm653 = vcmask 57344
    %654 = vst.msk [vmem:[#allocation3] sm:$0x1] %vm653, %v652
    // Predicated region
    $region30: #{tpu_custom_call.1} parent=1 // pred_check
      _
    $region31: #{tpu_custom_call.1} parent=1 // pred_check_branch
      %656 = sbr.rel (0) target = $region33
    $region32: #{tpu_custom_call.1} parent=1 // pred_region
      %658 = vsyncadd [#allocation4], 0
      %s660 = sshll.u32 [#allocation3], 4
      %s661 = int_to_ptr.vmem [resolvable:$true] %s660
      %s662 = sshll.u32 %s7, 4
      %s663 = int_to_ptr.hbm [resolvable:$true] %s662
      %665 = dma.vmem_to_hbm [thread:$0]  %s661, 16, %s663, [#allocation4]
    $region33: #{tpu_custom_call.1} parent=1 // pred_fallthru
      _
    // Predicated region
    $region34: #{tpu_custom_call.1} parent=1 // pred_check
      _
    $region35: #{tpu_custom_call.1} parent=1 // pred_check_branch
      %667 = sbr.rel (0) target = $region37
    $region36: #{tpu_custom_call.1} parent=1 // pred_region
      %669 = dma.done [#allocation4], 16
    $region37: #{tpu_custom_call.1} parent=1 // pred_fallthru
      _
    %670 = vsyncpa [#allocation4], 1

</llo_original>
